<compile_context>
chip_gen: v7x
topology: tpu7x:2x2x1
jax: 0.10.0
libtpu: 0.0.40
codegen_flags: <defaults>
</compile_context>

<pallas_src>
import jax
import jax.numpy as jnp
from jax import lax
from jax.experimental import pallas as pl
from jax.experimental.pallas import tpu as pltpu
import numpy as np

FEATURE_DIM = 4
KERNEL_SIZE = 3
PADDING = 1


def _dwconv_sigmoid_kernel(x_ref, w_ref, b_ref, o_ref):
    # x_ref: (row_tile, L)   rows = flattened (batch, channel); lanes = sequence
    # w_ref: (row_tile, K)   per-row conv taps (w of the row's channel)
    # b_ref: (row_tile, 1)   per-row bias
    # o_ref: (row_tile, L)   sigmoid(depthwise_conv1d(x))
    x = x_ref[...].astype(jnp.float32)
    w = w_ref[...].astype(jnp.float32)
    b = b_ref[...].astype(jnp.float32)
    rows, seq_len = x.shape
    taps = w.shape[1]

    # In-kernel zero padding of the sequence (lane) axis: no extra HBM pass.
    zcol = jnp.zeros((rows, PADDING), jnp.float32)
    xpad = jnp.concatenate([zcol, x, zcol], axis=1)  # (rows, L + 2*PADDING)

    # K is a tiny static constant -> unroll the taps.
    acc = xpad[:, 0:seq_len] * w[:, 0:1]
    for k in range(1, taps):
        acc = acc + xpad[:, k:k + seq_len] * w[:, k:k + 1]
    acc = acc + b  # (rows, 1) lane-broadcast

    o_ref[...] = jax.nn.sigmoid(acc).astype(o_ref.dtype)


def bayesian_masking_forward(x, w, b):
    """x: (N, C, L), w: (C, K), b: (C,) -> sigmoid(depthwise_conv1d(x) + b)."""
    N, C, L = x.shape
    assert w.shape == (C, KERNEL_SIZE) and b.shape == (C,)
    assert KERNEL_SIZE == 2 * PADDING + 1

    R = N * C
    x_rows = x.reshape(R, L)                    # free view, row = n*C + c
    w_rows = jnp.tile(w, (N, 1))                # (R, K),  w_rows[n*C + c] = w[c]
    b_rows = jnp.tile(b, (N,)).reshape(R, 1)    # (R, 1)

    # Row tile: sublane-dense (multiple of 8) that divides R; fall back to the
    # full row extent (always a legal block) otherwise.
    row_tile = R
    for cand in (256, 128, 64, 32, 16, 8):
        if R % cand == 0:
            row_tile = cand
            break
    grid = (R // row_tile,)

    out_rows = pl.pallas_call(
        _dwconv_sigmoid_kernel,
        out_shape=jax.ShapeDtypeStruct((R, L), x.dtype),
        grid_spec=pltpu.PrefetchScalarGridSpec(
            num_scalar_prefetch=0,
            grid=grid,
            in_specs=[
                pl.BlockSpec((row_tile, L), lambda r: (r, 0)),
                pl.BlockSpec((row_tile, KERNEL_SIZE), lambda r: (r, 0)),
                pl.BlockSpec((row_tile, 1), lambda r: (r, 0)),
            ],
            out_specs=pl.BlockSpec((row_tile, L), lambda r: (r, 0)),
        ),
        compiler_params=pltpu.CompilerParams(
            dimension_semantics=("parallel",),
        ),
    )(x_rows, w_rows, b_rows)

    return out_rows.reshape(N, C, L)


def _reference(x, w, b):
    # Pure-JAX reference: depthwise conv1d + sigmoid (matches nn.Conv1d semantics).
    rhs = w.reshape(FEATURE_DIM, 1, KERNEL_SIZE)  # (O, I/groups, K)
    out = lax.conv_general_dilated(
        x, rhs,
        window_strides=(1,),
        padding=((PADDING, PADDING),),
        dimension_numbers=("NCH", "OIH", "NCH"),
        feature_group_count=FEATURE_DIM,
    )
    return jax.nn.sigmoid(out + b[None, :, None])


if __name__ == "__main__":
    key = jax.random.PRNGKey(0)
    kx, kw, kb = jax.random.split(key, 3)

    # Small shapes consistent with the module: batch=2, channels=feature_dim=4, seq=16.
    N, C, L = 2, FEATURE_DIM, 16
    x = jax.random.normal(kx, (N, C, L), dtype=jnp.float32)

    # Deterministic parameter init mimicking nn.Conv1d default:
    # uniform(-bound, bound), bound = sqrt(groups / (in_channels * kernel_size)).
    bound = float(np.sqrt(1.0 / KERNEL_SIZE))
    w = jax.random.uniform(kw, (C, KERNEL_SIZE), jnp.float32, -bound, bound)
    b = jax.random.uniform(kb, (C,), jnp.float32, -bound, bound)

    out = jax.block_until_ready(bayesian_masking_forward(x, w, b))
    ref = jax.block_until_ready(_reference(x, w, b))
    np.testing.assert_allclose(np.asarray(out), np.asarray(ref), rtol=1e-5, atol=1e-5)

    print("KERNEL_OK")
</pallas_src>

<mosaic_0001>
module attributes {stable_mosaic.version = 11 : i64} {
  func.func @_dwconv_sigmoid_kernel(%arg0: i32, %arg1: memref<8x16xf32, #tpu.memory_space<vmem>>, %arg2: memref<8x3xf32, #tpu.memory_space<vmem>>, %arg3: memref<8x1xf32, #tpu.memory_space<vmem>>, %arg4: memref<8x16xf32, #tpu.memory_space<vmem>>) attributes {dimension_semantics = [#tpu.dimension_semantics<parallel>], iteration_bounds = array<i64: 1>, scalar_prefetch = 0 : i64, scratch_operands = 0 : i64, tpu.core_type = #tpu.core_type<tc>, window_params = [{transform_indices = @transform_0, window_bounds = array<i64: 8, 16>}, {transform_indices = @transform_1, window_bounds = array<i64: 8, 3>}, {transform_indices = @transform_2, window_bounds = array<i64: 8, 1>}, {transform_indices = @transform_3, window_bounds = array<i64: 8, 16>}]} {
    %c0 = arith.constant 0 : index
    %c0_0 = arith.constant 0 : index
    %0 = vector.load %arg1[%c0, %c0_0] : memref<8x16xf32, #tpu.memory_space<vmem>>, vector<8x16xf32>
    %c0_1 = arith.constant 0 : index
    %c0_2 = arith.constant 0 : index
    %1 = vector.load %arg2[%c0_1, %c0_2] : memref<8x3xf32, #tpu.memory_space<vmem>>, vector<8x3xf32>
    %c0_3 = arith.constant 0 : index
    %c0_4 = arith.constant 0 : index
    %2 = vector.load %arg3[%c0_3, %c0_4] : memref<8x1xf32, #tpu.memory_space<vmem>>, vector<8x1xf32>
    %cst = arith.constant 0.000000e+00 : f32
    %3 = vector.broadcast %cst : f32 to vector<8x1xf32>
    %4 = tpu.concatenate %3, %0, %3 in 1 : vector<8x1xf32>, vector<8x16xf32>, vector<8x1xf32> -> vector<8x18xf32>
    %5 = vector.extract_strided_slice %4 {offsets = [0, 0], sizes = [8, 16], strides = [1, 1]} : vector<8x18xf32> to vector<8x16xf32>
    %6 = vector.extract_strided_slice %1 {offsets = [0, 0], sizes = [8, 1], strides = [1, 1]} : vector<8x3xf32> to vector<8x1xf32>
    %7 = vector.broadcast %6 : vector<8x1xf32> to vector<8x16xf32>
    %8 = arith.mulf %5, %7 : vector<8x16xf32>
    %9 = vector.extract_strided_slice %4 {offsets = [0, 1], sizes = [8, 16], strides = [1, 1]} : vector<8x18xf32> to vector<8x16xf32>
    %10 = vector.extract_strided_slice %1 {offsets = [0, 1], sizes = [8, 1], strides = [1, 1]} : vector<8x3xf32> to vector<8x1xf32>
    %11 = vector.broadcast %10 : vector<8x1xf32> to vector<8x16xf32>
    %12 = arith.mulf %9, %11 : vector<8x16xf32>
    %13 = arith.addf %8, %12 : vector<8x16xf32>
    %14 = vector.extract_strided_slice %4 {offsets = [0, 2], sizes = [8, 16], strides = [1, 1]} : vector<8x18xf32> to vector<8x16xf32>
    %15 = vector.extract_strided_slice %1 {offsets = [0, 2], sizes = [8, 1], strides = [1, 1]} : vector<8x3xf32> to vector<8x1xf32>
    %16 = vector.broadcast %15 : vector<8x1xf32> to vector<8x16xf32>
    %17 = arith.mulf %14, %16 : vector<8x16xf32>
    %18 = arith.addf %13, %17 : vector<8x16xf32>
    %19 = vector.broadcast %2 : vector<8x1xf32> to vector<8x16xf32>
    %20 = arith.addf %18, %19 : vector<8x16xf32>
    %21 = arith.negf %20 : vector<8x16xf32>
    %22 = math.exp %21 : vector<8x16xf32>
    %cst_5 = arith.constant 1.000000e+00 : f32
    %23 = vector.broadcast %cst_5 : f32 to vector<8x16xf32>
    %24 = arith.addf %23, %22 : vector<8x16xf32>
    %25 = arith.divf %23, %24 : vector<8x16xf32>
    %c0_6 = arith.constant 0 : index
    %c0_7 = arith.constant 0 : index
    %26 = vector.load %arg4[%c0_6, %c0_7] : memref<8x16xf32, #tpu.memory_space<vmem>>, vector<8x16xf32>
    tpu.vector_store %arg4[%c0_6, %c0_7], %25 {strides = array<i32>} : memref<8x16xf32, #tpu.memory_space<vmem>>, vector<8x16xf32>,
    return
  }
  func.func @transform_0(%arg0: i32) -> (i32, i32) {
    %c0_i32 = arith.constant 0 : i32
    %c0_i32_0 = arith.constant 0 : i32
    return %arg0, %c0_i32 : i32, i32
  }
  func.func @transform_1(%arg0: i32) -> (i32, i32) {
    %c0_i32 = arith.constant 0 : i32
    %c0_i32_0 = arith.constant 0 : i32
    return %arg0, %c0_i32 : i32, i32
  }
  func.func @transform_2(%arg0: i32) -> (i32, i32) {
    %c0_i32 = arith.constant 0 : i32
    %c0_i32_0 = arith.constant 0 : i32
    return %arg0, %c0_i32 : i32, i32
  }
  func.func @transform_3(%arg0: i32) -> (i32, i32) {
    %c0_i32 = arith.constant 0 : i32
    %c0_i32_0 = arith.constant 0 : i32
    return %arg0, %c0_i32 : i32, i32
  }
}

</mosaic_0001>

<llo_original>
// kernel: tpu_custom_call.1
$region0: #{tpu_custom_call.1}
  #allocation0 [shape = 'u32[]', space=smem, size = 0x4, offset = 0x4, fixed_abs, tag = 'smem constant byte address 0x4 - core index']
  #allocation1 [shape = 'u32[144,128]{1,0:T(1,128)}', space=vmem, size = 0x12000, scoped, tag = 'internal scratch']
  %s0 = inlined_call_operand.vmem [shape: f32[8,16], index: 0, kind: input, shape index: {}]
  %s1 = inlined_call_operand.vmem [shape: f32[8,3], index: 1, kind: input, shape index: {}]
  %s2 = inlined_call_operand.vmem [shape: f32[8,1], index: 2, kind: input, shape index: {}]
  %s3 = inlined_call_operand.hbm [shape: f32[8,16], index: 3, kind: output, shape index: {}]
  %s4 = sld [smem:[#allocation0]]
  $region22: #{tpu_custom_call.1} parent=0
    _
  %s6 = ssub.s32 1, %s4
  %s7 = scalar_select 0, %s6, %s4
  $region1: #{tpu_custom_call.1} parent=0
    #allocation2 [shape = 'u8[4096]{0}', space=vmem, size = 0x1000, scoped, tag = 'output window, operand 0, single buffered']
    #allocation3 [shape = 's32[1]{0}', space=sflag, size = 0x4, scoped, tag = 'scoped memory for tpu_custom_call.1']
    %8 = vsyncpa [#allocation3], 0
    // Predicated region
    $region2: #{tpu_custom_call.1} parent=1 // pred_check
      _
    $region3: #{tpu_custom_call.1} parent=1 // pred_check_branch
      %10 = sbr.rel (0) target = $region5
    $region4: #{tpu_custom_call.1} parent=1 // pred_region
      _
    $region5: #{tpu_custom_call.1} parent=1 // pred_fallthru
      _
    // Predicated region
    $region6: #{tpu_custom_call.1} parent=1 // pred_check
      _
    $region7: #{tpu_custom_call.1} parent=1 // pred_check_branch
      %12 = sbr.rel (0) target = $region9
    $region8: #{tpu_custom_call.1} parent=1 // pred_region
      _
    $region9: #{tpu_custom_call.1} parent=1 // pred_fallthru
      _
    // Predicated region
    $region10: #{tpu_custom_call.1} parent=1 // pred_check
      _
    $region11: #{tpu_custom_call.1} parent=1 // pred_check_branch
      %14 = sbr.rel (0) target = $region13
    $region12: #{tpu_custom_call.1} parent=1 // pred_region
      _
    $region13: #{tpu_custom_call.1} parent=1 // pred_fallthru
      _
    %v15 = vld [vmem:[%s0] sm:$0xff]
    %v16 = vld [vmem:[%s1] sm:$0xff]
    %v17 = vld [vmem:[%s2] sm:$0xff]
    %19 = vrot.lane.b32.xlu0 %v15, 1
    %v20 = vpop.permute.xlu0 %19
    %vm22 = vcmask 7168
    %v23 = vsel %vm22, 0.0, %v20
    %vm24 = vcmask 138240
    %v25 = vsel %vm24, %v23, 0.0
    %27 = vset.pattern.permute.xlu0 0
    %28 = vperm.xlu0 %27, %v16
    %v29 = vpop.permute.xlu0 %28
    %v31 = vmul.f32 %v25, %v29
    %32 = vset.pattern.permute.xlu0 1
    %33 = vperm.xlu0 %32, %v16
    %v34 = vpop.permute.xlu0 %33
    %v36 = vmul.f32 %v25, %v34
    %38 = vrot.lane.b32.xlu0 %v36, 127
    %v39 = vpop.permute.xlu0 %38
    %v41 = vadd.f32 %v31, %v39
    %42 = vset.pattern.permute.xlu0 2
    %43 = vperm.xlu0 %42, %v16
    %v44 = vpop.permute.xlu0 %43
    %v46 = vmul.f32 %v25, %v44
    %48 = vrot.lane.b32.xlu0 %v46, 126
    %v49 = vpop.permute.xlu0 %48
    %v51 = vadd.f32 %v41, %v49
    %53 = vset.pattern.permute.xlu0 0
    %54 = vperm.xlu0 %53, %v17
    %v55 = vpop.permute.xlu0 %54
    %v57 = vadd.f32 %v51, %v55
    %v58 = vxor.u32 %v57, 2147483648
    %v59 = vmul.f32 %v58, 1.442695
    %v60 = vpow.pop %v59
    %v61 = vadd.f32 %v60, 1.0
    %v62 = vrcp.pop %v61
    %v63 = vmul.f32 1.0, %v62
    %vm64 = vcmask 130048
    %65 = vst.msk [vmem:[#allocation2] sm:$0xff] %vm64, %v63
    // Predicated region
    $region14: #{tpu_custom_call.1} parent=1 // pred_check
      _
    $region15: #{tpu_custom_call.1} parent=1 // pred_check_branch
      %67 = sbr.rel (0) target = $region17
    $region16: #{tpu_custom_call.1} parent=1 // pred_region
      %s69 = ssub.s32 128, 128
      %70 = vsyncadd [#allocation3], %s69
      %s72 = sshll.u32 [#allocation2], 4
      %s73 = int_to_ptr.vmem [resolvable:$true] %s72
      %75 = dma.vmem_to_hbm [thread:$0]  %s73, 128, %s3, [#allocation3]
    $region17: #{tpu_custom_call.1} parent=1 // pred_fallthru
      _
    // Predicated region
    $region18: #{tpu_custom_call.1} parent=1 // pred_check
      _
    $region19: #{tpu_custom_call.1} parent=1 // pred_check_branch
      %77 = sbr.rel (0) target = $region21
    $region20: #{tpu_custom_call.1} parent=1 // pred_region
      %78 = dma.done [#allocation3], 128
    $region21: #{tpu_custom_call.1} parent=1 // pred_fallthru
      _
    %79 = vsyncpa [#allocation3], 1

</llo_original>
